<compile_context>
chip_gen: v7x
topology: tpu7x:2x2x1
jax: 0.10.0
libtpu: 0.0.40
codegen_flags: <defaults>
</compile_context>

<pallas_src>
import functools

import jax
import jax.numpy as jnp
from jax.experimental import pallas as pl
from jax.experimental.pallas import tpu as pltpu

LANES = 128  # vreg lane width


def symbolic21_kernel(p_ref, x3_ref, x4_ref, o_ref):
    # p_ref : SMEM (8,)             -- learned scalar parameters
    # x3_ref: VMEM (tile_rows, 128) -- feature 3, lane-dense
    # x4_ref: VMEM (tile_rows, 128) -- feature 4, lane-dense
    # o_ref : VMEM (tile_rows, 128) -- result, lane-dense
    x3 = x3_ref[...]
    x4 = x4_ref[...]

    p0 = p_ref[0]
    p1 = p_ref[1]
    p2 = p_ref[2]
    p3 = p_ref[3]
    p4 = p_ref[4]
    p5 = p_ref[5]
    p6 = p_ref[6]
    p7 = p_ref[7]

    num = x3 * p0 + p1 * x4
    den = (x3 * p2 + p3 * x4) * (x3 * p4 + p5 * x4) * p6 + p7
    # Exact reciprocal (approx=False) keeps results within ULPs of num / den
    # while routing the divide through the otherwise-idle EUP.
    o_ref[...] = num * pl.reciprocal(den, approx=False)


@functools.partial(jax.jit, static_argnames=("tile_rows",))
def symbolic21_forward(x, p, tile_rows=512):
    """x: (B, F) float32, p: (8,) float32 -> r: (B,) float32."""
    B = x.shape[0]

    # Wrapper-side layout plumbing: extract only the two used columns.
    x3 = x[:, 3]
    x4 = x[:, 4]

    # Lane-dense layout: view the batch as (rows, 128).
    rows = -(-B // LANES)                                  # ceil(B / 128)
    t = min(tile_rows, max(8, ((rows + 7) // 8) * 8))      # sublane multiple of 8
    rows_pad = ((rows + t - 1) // t) * t
    b_pad = rows_pad * LANES
    pad = b_pad - B

    # Zero padding is safe: den = p7 != 0 for padded elements (finite result),
    # and padded rows are sliced off below anyway.
    x3p = jnp.pad(x3, (0, pad)).reshape(rows_pad, LANES)
    x4p = jnp.pad(x4, (0, pad)).reshape(rows_pad, LANES)

    out = pl.pallas_call(
        symbolic21_kernel,
        out_shape=jax.ShapeDtypeStruct((rows_pad, LANES), jnp.float32),
        grid_spec=pltpu.PrefetchScalarGridSpec(
            num_scalar_prefetch=0,
            grid=(rows_pad // t,),
            in_specs=[
                pl.BlockSpec(memory_space=pltpu.MemorySpace.SMEM),  # params (8,)
                pl.BlockSpec((t, LANES), lambda i: (i, 0)),         # x3 tile
                pl.BlockSpec((t, LANES), lambda i: (i, 0)),         # x4 tile
            ],
            out_specs=pl.BlockSpec((t, LANES), lambda i: (i, 0)),
        ),
        compiler_params=pltpu.CompilerParams(
            dimension_semantics=("parallel",),  # shard batch tiles across TCs (v7x)
        ),
    )(p, x3p, x4p)

    return out.reshape(b_pad)[:B]


def make_params():
    # Deterministic init: exact values from the module's __init__.
    return jnp.array(
        [3.9907198, 1.0, 4.0490804, 1.0, 4.0139728, 1.0, -0.19251533, -1.1983613],
        dtype=jnp.float32,
    )


def reference_forward(x, p):
    # Pure-JAX reference mirroring the PyTorch forward exactly.
    num = x[:, 3] * p[0] + p[1] * x[:, 4]
    den = (x[:, 3] * p[2] + p[3] * x[:, 4]) * (x[:, 3] * p[4] + p[5] * x[:, 4]) * p[6] + p[7]
    return num / den


if __name__ == "__main__":
    key = jax.random.PRNGKey(0)
    p = make_params()

    # Small batch matching the module's cartpole-swingup state (5 features).
    B1, F = 8, 5
    x1 = jax.random.normal(key, (B1, F), dtype=jnp.float32)
    r1 = symbolic21_forward(x1, p)
    jax.block_until_ready(r1)
    assert r1.shape == (B1,)
    assert jnp.allclose(r1, reference_forward(x1, p), rtol=1e-5, atol=1e-5)

    # Slightly larger, non-aligned batch with a tiny tile to exercise the
    # multi-block grid + padding path.
    B2 = 2085
    x2 = jax.random.normal(jax.random.PRNGKey(1), (B2, F), dtype=jnp.float32)
    r2 = symbolic21_forward(x2, p, tile_rows=8)
    jax.block_until_ready(r2)
    assert r2.shape == (B2,)
    assert jnp.allclose(r2, reference_forward(x2, p), rtol=1e-5, atol=1e-5)

    print("KERNEL_OK")
</pallas_src>

<mosaic_0001>
module attributes {stable_mosaic.version = 11 : i64} {
  func.func @symbolic21_kernel(%arg0: i32, %arg1: memref<8xf32, #tpu.memory_space<smem>>, %arg2: memref<8x128xf32, #tpu.memory_space<vmem>>, %arg3: memref<8x128xf32, #tpu.memory_space<vmem>>, %arg4: memref<8x128xf32, #tpu.memory_space<vmem>>) attributes {dimension_semantics = [#tpu.dimension_semantics<parallel>], iteration_bounds = array<i64: 1>, scalar_prefetch = 0 : i64, scratch_operands = 0 : i64, tpu.core_type = #tpu.core_type<tc>, window_params = [{transform_indices = @transform_0, window_bounds = array<i64: 8>}, {transform_indices = @transform_1, window_bounds = array<i64: 8, 128>}, {transform_indices = @transform_2, window_bounds = array<i64: 8, 128>}, {transform_indices = @transform_3, window_bounds = array<i64: 8, 128>}]} {
    %c0 = arith.constant 0 : index
    %c0_0 = arith.constant 0 : index
    %0 = vector.load %arg2[%c0, %c0_0] : memref<8x128xf32, #tpu.memory_space<vmem>>, vector<8x128xf32>
    %c0_1 = arith.constant 0 : index
    %c0_2 = arith.constant 0 : index
    %1 = vector.load %arg3[%c0_1, %c0_2] : memref<8x128xf32, #tpu.memory_space<vmem>>, vector<8x128xf32>
    %c0_3 = arith.constant 0 : index
    %2 = memref.load %arg1[%c0_3] : memref<8xf32, #tpu.memory_space<smem>>
    %c1 = arith.constant 1 : index
    %3 = memref.load %arg1[%c1] : memref<8xf32, #tpu.memory_space<smem>>
    %c2 = arith.constant 2 : index
    %4 = memref.load %arg1[%c2] : memref<8xf32, #tpu.memory_space<smem>>
    %c3 = arith.constant 3 : index
    %5 = memref.load %arg1[%c3] : memref<8xf32, #tpu.memory_space<smem>>
    %c4 = arith.constant 4 : index
    %6 = memref.load %arg1[%c4] : memref<8xf32, #tpu.memory_space<smem>>
    %c5 = arith.constant 5 : index
    %7 = memref.load %arg1[%c5] : memref<8xf32, #tpu.memory_space<smem>>
    %c6 = arith.constant 6 : index
    %8 = memref.load %arg1[%c6] : memref<8xf32, #tpu.memory_space<smem>>
    %c7 = arith.constant 7 : index
    %9 = memref.load %arg1[%c7] : memref<8xf32, #tpu.memory_space<smem>>
    %10 = vector.broadcast %2 : f32 to vector<8x128xf32>
    %11 = arith.mulf %0, %10 : vector<8x128xf32>
    %12 = vector.broadcast %3 : f32 to vector<8x128xf32>
    %13 = arith.mulf %12, %1 : vector<8x128xf32>
    %14 = arith.addf %11, %13 : vector<8x128xf32>
    %15 = vector.broadcast %4 : f32 to vector<8x128xf32>
    %16 = arith.mulf %0, %15 : vector<8x128xf32>
    %17 = vector.broadcast %5 : f32 to vector<8x128xf32>
    %18 = arith.mulf %17, %1 : vector<8x128xf32>
    %19 = arith.addf %16, %18 : vector<8x128xf32>
    %20 = vector.broadcast %6 : f32 to vector<8x128xf32>
    %21 = arith.mulf %0, %20 : vector<8x128xf32>
    %22 = vector.broadcast %7 : f32 to vector<8x128xf32>
    %23 = arith.mulf %22, %1 : vector<8x128xf32>
    %24 = arith.addf %21, %23 : vector<8x128xf32>
    %25 = arith.mulf %19, %24 : vector<8x128xf32>
    %26 = vector.broadcast %8 : f32 to vector<8x128xf32>
    %27 = arith.mulf %25, %26 : vector<8x128xf32>
    %28 = vector.broadcast %9 : f32 to vector<8x128xf32>
    %29 = arith.addf %27, %28 : vector<8x128xf32>
    %30 = tpu.reciprocal %29 : vector<8x128xf32> -> vector<8x128xf32>
    %31 = arith.mulf %14, %30 : vector<8x128xf32>
    %c0_4 = arith.constant 0 : index
    %c0_5 = arith.constant 0 : index
    %32 = vector.load %arg4[%c0_4, %c0_5] : memref<8x128xf32, #tpu.memory_space<vmem>>, vector<8x128xf32>
    tpu.vector_store %arg4[%c0_4, %c0_5], %31 {strides = array<i32>} : memref<8x128xf32, #tpu.memory_space<vmem>>, vector<8x128xf32>,
    return
  }
  func.func @transform_0(%arg0: i32) -> i32 {
    %c0_i32 = arith.constant 0 : i32
    %c0_i32_0 = arith.constant 0 : i32
    return %c0_i32 : i32
  }
  func.func @transform_1(%arg0: i32) -> (i32, i32) {
    %c0_i32 = arith.constant 0 : i32
    %c0_i32_0 = arith.constant 0 : i32
    return %arg0, %c0_i32 : i32, i32
  }
  func.func @transform_2(%arg0: i32) -> (i32, i32) {
    %c0_i32 = arith.constant 0 : i32
    %c0_i32_0 = arith.constant 0 : i32
    return %arg0, %c0_i32 : i32, i32
  }
  func.func @transform_3(%arg0: i32) -> (i32, i32) {
    %c0_i32 = arith.constant 0 : i32
    %c0_i32_0 = arith.constant 0 : i32
    return %arg0, %c0_i32 : i32, i32
  }
}

</mosaic_0001>

<llo_original>
// kernel: symbolic21_forward.1
$region0: #{symbolic21_forward.1}
  #allocation0 [shape = 'u32[]', space=smem, size = 0x4, offset = 0x4, fixed_abs, tag = 'smem constant byte address 0x4 - core index']
  #allocation1 [shape = 'u32[144,128]{1,0:T(1,128)}', space=vmem, size = 0x12000, scoped, tag = 'internal scratch']
  %s0 = inlined_call_operand.vmem [shape: f32[8], index: 0, kind: input, shape index: {}]
  %s1 = inlined_call_operand.vmem [shape: f32[8,128], index: 1, kind: input, shape index: {}]
  %s2 = inlined_call_operand.vmem [shape: f32[8,128], index: 2, kind: input, shape index: {}]
  %s3 = inlined_call_operand.vmem [shape: f32[8,128], index: 3, kind: output, shape index: {}]
  %s4 = sld [smem:[#allocation0]]
  $region26: #{symbolic21_forward.1} parent=0
    _
  %s6 = ssub.s32 1, %s4
  %s7 = scalar_select 0, %s6, %s4
  $region1: #{symbolic21_forward.1} parent=0
    #allocation2 [shape = 'u8[512]{0}', space=smem, size = 0x200, scoped, tag = 'input window, operand 0, single buffered']
    #allocation3 [shape = 's32[1]{0}', space=sflag, size = 0x4, scoped, tag = 'scoped memory for symbolic21_forward.1']
    %8 = vsyncpa [#allocation3], 0
    // Predicated region
    $region2: #{symbolic21_forward.1} parent=1 // pred_check
      _
    $region3: #{symbolic21_forward.1} parent=1 // pred_check_branch
      %10 = sbr.rel (0) target = $region5
    $region4: #{symbolic21_forward.1} parent=1 // pred_region
      %s12 = ssub.s32 16, 16
      %13 = vsyncadd [#allocation3], %s12
      %s15 = sshll.u32 %s0, 4
      %s16 = int_to_ptr.vmem [resolvable:$true] %s15
      %18 = dma.vmem_to_smem %s16, 16, [#allocation2], [#allocation3]
    $region5: #{symbolic21_forward.1} parent=1 // pred_fallthru
      _
    // Predicated region
    $region6: #{symbolic21_forward.1} parent=1 // pred_check
      _
    $region7: #{symbolic21_forward.1} parent=1 // pred_check_branch
      %20 = sbr.rel (0) target = $region9
    $region8: #{symbolic21_forward.1} parent=1 // pred_region
      _
    $region9: #{symbolic21_forward.1} parent=1 // pred_fallthru
      _
    // Predicated region
    $region10: #{symbolic21_forward.1} parent=1 // pred_check
      _
    $region11: #{symbolic21_forward.1} parent=1 // pred_check_branch
      %22 = sbr.rel (0) target = $region13
    $region12: #{symbolic21_forward.1} parent=1 // pred_region
      _
    $region13: #{symbolic21_forward.1} parent=1 // pred_fallthru
      _
    // Predicated region
    $region14: #{symbolic21_forward.1} parent=1 // pred_check
      _
    $region15: #{symbolic21_forward.1} parent=1 // pred_check_branch
      %24 = sbr.rel (0) target = $region17
    $region16: #{symbolic21_forward.1} parent=1 // pred_region
      %25 = dma.done [#allocation3], 16
    $region17: #{symbolic21_forward.1} parent=1 // pred_fallthru
      _
    %26 = sfence
    %v27 = vld [vmem:[%s1] sm:$0xff]
    %v28 = vld [vmem:[%s2] sm:$0xff]
    %s29 = sld [smem:[#allocation2]]
    %s30 = sld [smem:[#allocation2 + $0x1]]
    %s31 = sld [smem:[#allocation2 + $0x2]]
    %s32 = sld [smem:[#allocation2 + $0x3]]
    %s33 = sld [smem:[#allocation2 + $0x4]]
    %s34 = sld [smem:[#allocation2 + $0x5]]
    %s35 = sld [smem:[#allocation2 + $0x6]]
    %s36 = sld [smem:[#allocation2 + $0x7]]
    %v37 = vstv %s29
    %v38 = vmul.f32 %v27, %v37
    %v39 = vstv %s30
    %v40 = vmul.f32 %v39, %v28
    %v41 = vadd.f32 %v38, %v40
    %v42 = vstv %s31
    %v43 = vmul.f32 %v27, %v42
    %v44 = vstv %s32
    %v45 = vmul.f32 %v44, %v28
    %v46 = vadd.f32 %v43, %v45
    %v47 = vstv %s33
    %v48 = vmul.f32 %v27, %v47
    %v49 = vstv %s34
    %v50 = vmul.f32 %v49, %v28
    %v51 = vadd.f32 %v48, %v50
    %v52 = vmul.f32 %v46, %v51
    %v53 = vstv %s35
    %v54 = vmul.f32 %v52, %v53
    %v55 = vstv %s36
    %v56 = vadd.f32 %v54, %v55
    %v57 = vrcp.pop %v56
    %v58 = vmul.f32 %v41, %v57
    %59 = vst [vmem:[%s3] sm:$0xff] %v58
    // Predicated region
    $region18: #{symbolic21_forward.1} parent=1 // pred_check
      _
    $region19: #{symbolic21_forward.1} parent=1 // pred_check_branch
      %61 = sbr.rel (0) target = $region21
    $region20: #{symbolic21_forward.1} parent=1 // pred_region
      _
    $region21: #{symbolic21_forward.1} parent=1 // pred_fallthru
      _
    // Predicated region
    $region22: #{symbolic21_forward.1} parent=1 // pred_check
      _
    $region23: #{symbolic21_forward.1} parent=1 // pred_check_branch
      %63 = sbr.rel (0) target = $region25
    $region24: #{symbolic21_forward.1} parent=1 // pred_region
      _
    $region25: #{symbolic21_forward.1} parent=1 // pred_fallthru
      _
    %64 = vsyncpa [#allocation3], 1

</llo_original>
